<compile_context>
chip_gen: v7x
topology: tpu7x:2x2x1
jax: 0.10.0
libtpu: 0.0.40
codegen_flags: <defaults>
</compile_context>

<pallas_src>
import functools

import jax
import jax.numpy as jnp
from jax.experimental import pallas as pl
from jax.experimental.pallas import tpu as pltpu


def _label_smoothing_kernel(x_ref, t_ref, out_ref, *, smoothing, n_total):
    """One batch tile -> one (1, 8, 128) block holding this tile's scaled loss sum."""
    x = x_ref[...]                                   # (TB, C) in input dtype
    tb, c = x.shape

    # Row max in the native dtype (exact; bf16 packs 2 rows/sublane -> cheaper
    # reduce on v6e/v7x), then a single f32 upcast fused into the subtraction.
    m = jnp.max(x, axis=-1, keepdims=True)           # (TB, 1)
    z = x.astype(jnp.float32) - m.astype(jnp.float32)            # (TB, C) f32
    lse = jnp.log(jnp.sum(jnp.exp(z), axis=-1, keepdims=True))   # (TB, 1)

    off_val = jnp.float32(smoothing / (c - 1.0))
    on_val = jnp.float32(1.0 - smoothing)

    # Fused weighted reduce.  With w_c = off + (on-off)*[c==tgt]:
    #   sum_c w_c * logp_c = sum_c w_c * z_c - lse * sum_c w_c,
    # and sum_c w_c = off*(C-1) + on = 1 exactly.
    col = jax.lax.broadcasted_iota(jnp.int32, (tb, c), 1)
    tgt = t_ref[...]                                 # (TB, 1) int32
    w = jnp.where(col == tgt, on_val, off_val)       # (TB, C) f32
    wz = jnp.sum(w * z, axis=-1, keepdims=True)      # single lane reduce
    row_loss = -(wz - lse)                           # (TB, 1)

    # Mask rows of the ragged last block (x is not padded in the wrapper, so
    # the overhang rows hold undefined data; the select discards them).
    row = jax.lax.broadcasted_iota(jnp.int32, (tb, 1), 0)
    valid = (pl.program_id(0) * tb + row) < n_total
    row_loss = jnp.where(valid, row_loss, jnp.float32(0.0))

    # Lane-dense, unmasked store of this tile's partial sum, pre-scaled so a
    # plain dense sum of the whole partials array recovers the total.
    scale = jnp.float32(1.0 / float(out_ref.shape[-2] * out_ref.shape[-1]))
    out_ref[...] = jnp.broadcast_to(jnp.sum(row_loss) * scale, out_ref.shape)


def _row_align(dtype):
    # Sublane packing: f32 -> 8 rows, bf16/f16 -> 16, int8/fp8 -> 32.
    return 8 * max(1, 4 // jnp.dtype(dtype).itemsize)


def _round_up(v, m):
    return ((v + m - 1) // m) * m


def _default_vmem_limit_bytes():
    # Generation-aware scoped-VMEM request: ~half of physical capacity
    # (128 MiB on v5e/v6e -> 64 MiB; 64 MiB on v7x -> 32 MiB).
    try:
        phys = int(pltpu.get_tpu_info().vmem_capacity_bytes)
    except Exception:
        phys = 64 * 1024 * 1024          # conservative (v7x physical) fallback
    return max(16 * 1024 * 1024, min(phys // 2, 64 * 1024 * 1024))


def _auto_tile_b(n, c, dtype, vmem_limit_bytes):
    itemsize = jnp.dtype(dtype).itemsize
    # True per-row VMEM footprint of one grid step:
    #   2x double-buffered input rows (input dtype) + ~4 f32 (TB, C)
    #   temporaries (z, exp(z), weight select, weighted product).
    per_row_bytes = c * (2 * itemsize + 4 * 4)
    budget = vmem_limit_bytes // 2        # headroom for output blocks / scratch
    rows = max(1, budget // max(1, per_row_bytes))
    rows = min(rows, 4096)
    align = _row_align(dtype)
    # Keep num_tiles >= 4 when possible so the "parallel" batch axis can be
    # sharded across both v7x TensorCores (no effect on 1-TC v5e/v6e).
    rows = min(rows, _round_up(-(-n // 4), align))
    return max(align, (rows // align) * align)


def label_smoothing_loss(x, target, smoothing=0.0, *, tile_b=None,
                         vmem_limit_bytes=None):
    """x: (N, C) float logits (f32 or bf16); target: (N,) int class ids."""
    n, c = x.shape
    if vmem_limit_bytes is None:
        vmem_limit_bytes = _default_vmem_limit_bytes()
    align = _row_align(x.dtype)
    if tile_b is None:
        tile_b = _auto_tile_b(n, c, x.dtype, vmem_limit_bytes)
    # Dtype-dependent sublane alignment (bf16 needs 16-row tiles); never tile
    # past the (aligned) batch.
    tile_b = max(align, _round_up(tile_b, align))
    tile_b = min(tile_b, _round_up(n, align))

    num_tiles = int(pl.cdiv(n, tile_b))
    target2d = target.astype(jnp.int32).reshape(n, 1)

    kernel = functools.partial(
        _label_smoothing_kernel, smoothing=float(smoothing), n_total=n
    )

    partials = pl.pallas_call(
        kernel,
        out_shape=jax.ShapeDtypeStruct((num_tiles, 8, 128), jnp.float32),
        grid_spec=pltpu.PrefetchScalarGridSpec(
            num_scalar_prefetch=0,
            grid=(num_tiles,),
            in_specs=[
                # Logits tile: the dominant HBM traffic (bf16 input halves it).
                # The ragged last block is NOT padded; the kernel masks rows.
                pl.BlockSpec((tile_b, c), lambda i: (i, 0)),
                # Targets ride along as a (tile_b, 1) int32 column (tiny DMA).
                pl.BlockSpec((tile_b, 1), lambda i: (i, 0)),
            ],
            # Each grid step owns its own (8,128)-tiled partial-sum block, so
            # there is no cross-step accumulator and the axis can be parallel.
            out_specs=pl.BlockSpec((1, 8, 128), lambda i: (i, 0, 0)),
        ),
        compiler_params=pltpu.CompilerParams(
            dimension_semantics=("parallel",),
            vmem_limit_bytes=int(vmem_limit_bytes),
        ),
    )(x, target2d)

    # Dense epilogue reduce (partials are pre-scaled by 1/1024), then the mean.
    return jnp.sum(partials) / jnp.float32(n)


def _reference(x, target, smoothing):
    log_prob = jax.nn.log_softmax(x, axis=-1)
    n, c = x.shape
    weight = jnp.full((n, c), smoothing / (c - 1.0), dtype=jnp.float32)
    weight = weight.at[jnp.arange(n), target].set(1.0 - smoothing)
    return (-weight * log_prob).sum(axis=-1).mean()


if __name__ == "__main__":
    key = jax.random.PRNGKey(0)
    kx, kt, kx2, kt2, kx3, kt3 = jax.random.split(key, 6)
    smoothing = 0.1

    # Case 1: small, tile-aligned f32 logits ((N, C), class dim last like the
    # PyTorch module's dim=-1 softmax).  Auto tile -> 2 grid steps.
    N, C = 16, 32
    x = jax.random.normal(kx, (N, C), dtype=jnp.float32)
    target = jax.random.randint(kt, (N,), 0, C, dtype=jnp.int32)
    loss = jax.block_until_ready(label_smoothing_loss(x, target, smoothing=smoothing))
    ref = _reference(x, target, smoothing)
    assert jnp.allclose(loss, ref, atol=1e-4, rtol=1e-5), (loss, ref)

    # Case 2: ragged batch (N not a multiple of the tile), bf16 logits; the
    # wrapper rounds the requested tile up to the 16-row bf16 minimum and the
    # last block's overhang rows are masked in-kernel (no wrapper-side pad).
    N2, C2 = 20, 40
    x2 = jax.random.normal(kx2, (N2, C2), dtype=jnp.float32).astype(jnp.bfloat16)
    target2 = jax.random.randint(kt2, (N2,), 0, C2, dtype=jnp.int32)
    loss2 = jax.block_until_ready(
        label_smoothing_loss(x2, target2, smoothing=smoothing, tile_b=8))
    ref2 = _reference(x2.astype(jnp.float32), target2, smoothing)
    assert jnp.allclose(loss2, ref2, atol=1e-4, rtol=1e-5), (loss2, ref2)

    # Case 3: ragged f32 batch with auto tiling (exercises the unpadded ragged
    # last block for f32 as well).
    N3, C3 = 13, 64
    x3 = jax.random.normal(kx3, (N3, C3), dtype=jnp.float32)
    target3 = jax.random.randint(kt3, (N3,), 0, C3, dtype=jnp.int32)
    loss3 = jax.block_until_ready(label_smoothing_loss(x3, target3, smoothing=smoothing))
    ref3 = _reference(x3, target3, smoothing)
    assert jnp.allclose(loss3, ref3, atol=1e-4, rtol=1e-5), (loss3, ref3)

    print("KERNEL_OK")
</pallas_src>

<mosaic_0001>
module attributes {stable_mosaic.version = 11 : i64} {
  func.func @_label_smoothing_kernel(%arg0: i32, %arg1: memref<8x32xf32, #tpu.memory_space<vmem>>, %arg2: memref<8x1xi32, #tpu.memory_space<vmem>>, %arg3: memref<1x8x128xf32, #tpu.memory_space<vmem>>) attributes {dimension_semantics = [#tpu.dimension_semantics<parallel>], iteration_bounds = array<i64: 2>, scalar_prefetch = 0 : i64, scratch_operands = 0 : i64, tpu.core_type = #tpu.core_type<tc>, window_params = [{transform_indices = @transform_0, window_bounds = array<i64: 8, 32>}, {transform_indices = @transform_1, window_bounds = array<i64: 8, 1>}, {transform_indices = @transform_2, window_bounds = array<i64: 1, 8, 128>}]} {
    %c0 = arith.constant 0 : index
    %c0_0 = arith.constant 0 : index
    %0 = vector.load %arg1[%c0, %c0_0] : memref<8x32xf32, #tpu.memory_space<vmem>>, vector<8x32xf32>
    %cst = arith.constant dense<0xFF800000> : vector<8xf32>
    %1 = vector.multi_reduction <maximumf>, %0, %cst [1] : vector<8x32xf32> to vector<8xf32>
    %2 = vector.shape_cast %1 : vector<8xf32> to vector<8x1xf32>
    %3 = vector.broadcast %2 : vector<8x1xf32> to vector<8x32xf32>
    %4 = arith.subf %0, %3 : vector<8x32xf32>
    %5 = math.exp %4 : vector<8x32xf32>
    %cst_1 = arith.constant dense<0.000000e+00> : vector<8xf32>
    %6 = vector.multi_reduction <add>, %5, %cst_1 [1] : vector<8x32xf32> to vector<8xf32>
    %7 = vector.shape_cast %6 : vector<8xf32> to vector<8x1xf32>
    %8 = math.log %7 : vector<8x1xf32>
    %9 = tpu.iota {dimensions = array<i32: 1>} : vector<8x32xi32>
    %c0_2 = arith.constant 0 : index
    %c0_3 = arith.constant 0 : index
    %10 = vector.load %arg2[%c0_2, %c0_3] : memref<8x1xi32, #tpu.memory_space<vmem>>, vector<8x1xi32>
    %11 = vector.broadcast %10 : vector<8x1xi32> to vector<8x32xi32>
    %12 = arith.cmpi eq, %9, %11 : vector<8x32xi32>
    %cst_4 = arith.constant 0.899999976 : f32
    %cst_5 = arith.constant 0.0032258064 : f32
    %13 = vector.broadcast %cst_4 : f32 to vector<8x32xf32>
    %14 = vector.broadcast %cst_5 : f32 to vector<8x32xf32>
    %15 = arith.select %12, %13, %14 : vector<8x32xi1>, vector<8x32xf32>
    %16 = arith.mulf %15, %4 : vector<8x32xf32>
    %cst_6 = arith.constant dense<0.000000e+00> : vector<8xf32>
    %17 = vector.multi_reduction <add>, %16, %cst_6 [1] : vector<8x32xf32> to vector<8xf32>
    %18 = vector.shape_cast %17 : vector<8xf32> to vector<8x1xf32>
    %19 = arith.subf %18, %8 : vector<8x1xf32>
    %cst_7 = arith.constant 0.000000e+00 : f32
    %20 = vector.broadcast %cst_7 : f32 to vector<8x1xf32>
    %21 = arith.subf %20, %19 : vector<8x1xf32>
    %22 = tpu.iota {dimensions = array<i32: 0>} : vector<8x1xi32>
    %c8_i32 = arith.constant 8 : i32
    %23 = arith.muli %arg0, %c8_i32 : i32
    %24 = vector.broadcast %23 : i32 to vector<8x1xi32>
    %25 = arith.addi %24, %22 : vector<8x1xi32>
    %c16_i32 = arith.constant 16 : i32
    %26 = vector.broadcast %c16_i32 : i32 to vector<8x1xi32>
    %27 = arith.cmpi slt, %25, %26 : vector<8x1xi32>
    %cst_8 = arith.constant 0.000000e+00 : f32
    %28 = vector.broadcast %cst_8 : f32 to vector<8x1xf32>
    %29 = arith.select %27, %21, %28 : vector<8x1xi1>, vector<8x1xf32>
    %30 = vector.shape_cast %29 : vector<8x1xf32> to vector<1x8x1xf32>
    %cst_9 = arith.constant dense<0.000000e+00> : vector<1xf32>
    %31 = vector.multi_reduction <add>, %30, %cst_9 [1, 2] : vector<1x8x1xf32> to vector<1xf32>
    %32 = vector.shape_cast %31 : vector<1xf32> to vector<1x1x1xf32>
    %33 = vector.extract %32[0, 0, 0] : f32 from vector<1x1x1xf32>
    %cst_10 = arith.constant 9.765625E-4 : f32
    %34 = arith.mulf %33, %cst_10 : f32
    %35 = vector.broadcast %34 : f32 to vector<1x8x128xf32>
    %c0_11 = arith.constant 0 : index
    %c0_12 = arith.constant 0 : index
    %c0_13 = arith.constant 0 : index
    %36 = vector.load %arg3[%c0_11, %c0_12, %c0_13] : memref<1x8x128xf32, #tpu.memory_space<vmem>>, vector<1x8x128xf32>
    tpu.vector_store %arg3[%c0_11, %c0_12, %c0_13], %35 {strides = array<i32>} : memref<1x8x128xf32, #tpu.memory_space<vmem>>, vector<1x8x128xf32>,
    return
  }
  func.func @transform_0(%arg0: i32) -> (i32, i32) {
    %c0_i32 = arith.constant 0 : i32
    %c0_i32_0 = arith.constant 0 : i32
    return %arg0, %c0_i32 : i32, i32
  }
  func.func @transform_1(%arg0: i32) -> (i32, i32) {
    %c0_i32 = arith.constant 0 : i32
    %c0_i32_0 = arith.constant 0 : i32
    return %arg0, %c0_i32 : i32, i32
  }
  func.func @transform_2(%arg0: i32) -> (i32, i32, i32) {
    %c0_i32 = arith.constant 0 : i32
    %c0_i32_0 = arith.constant 0 : i32
    %c0_i32_1 = arith.constant 0 : i32
    return %arg0, %c0_i32, %c0_i32_0 : i32, i32, i32
  }
}

</mosaic_0001>

<llo_original>
// kernel: tpu_custom_call.1
$region0: #{tpu_custom_call.1}
  #allocation0 [shape = 'u32[]', space=smem, size = 0x4, offset = 0x4, fixed_abs, tag = 'smem constant byte address 0x4 - core index']
  #allocation1 [shape = 'u32[144,128]{1,0:T(1,128)}', space=vmem, size = 0x12000, scoped, tag = 'internal scratch']
  %s0 = inlined_call_operand.vmem [shape: f32[16,32], index: 0, kind: input, shape index: {}]
  %s1 = inlined_call_operand.vmem [shape: s32[16,1], index: 1, kind: input, shape index: {}]
  %s2 = inlined_call_operand.hbm [shape: f32[2,8,128], index: 2, kind: output, shape index: {}]
  %s3 = sld [smem:[#allocation0]]
  $region41: #{tpu_custom_call.1} parent=0
    _
  %s5 = ssub.s32 1, %s3
  %s6 = scalar_select 0, %s5, %s3
  $region1: #{tpu_custom_call.1} parent=0
    #allocation2 [shape = 'u8[8192]{0}', space=vmem, size = 0x2000, scoped, tag = 'output window, operand 0']
    #allocation3 [shape = 's32[2]{0}', space=sflag, size = 0x8, scoped, tag = 'scoped memory for tpu_custom_call.1']
    %7 = vsyncpa [#allocation3], 0
    %s8 = scalar_lea.sflag [#allocation3], 1
    %9 = vsyncpa %s8, 0
    loop: start=0, step=1, limit=4
    $region2: #{tpu_custom_call.1} parent=1 // loop_pre_header
      _
    $region3: #{tpu_custom_call.1} parent=1 // loop_header
      %s11 = sphi 0, %s15
      %p12 = scmp.ge.s32.totalorder %s11, 4
      %s21 = sphi 0, %s23
      %s24 = sphi 0, %s21
      %s25 = sphi 0, %s24
      %s41 = sphi 0, %s25
      %s47 = sphi 0, %s49
      %s50 = sphi 0, %s47
      %s51 = sphi 0, %s50
      %s67 = sphi 0, %s51
      %s73 = sphi 0, %s75
      %s76 = sphi 0, %s73
      %s77 = sphi 0, %s76
      %s93 = sphi 0, %s77
    $region4: #{tpu_custom_call.1} parent=1 // loop_header_branch
      %14 = sbr.rel (%p12) target = $region8
    $region5: #{tpu_custom_call.1} parent=1 // loop_body
      %s16 = ssub.s32 %s11, 1
      %s17 = ssub.s32 %s11, 2
      %s18 = sadd.s32 %s11, 1
      %s19 = ssub.s32 %s11, %s18
      %p20 = scmp.eq.s32.totalorder %s19, 0
      %s22 = sadd.s32 %s21, 1
      %s23 = scalar_select %p20, %s21, %s22
      %p26 = pneg %p20
      %p27 = scmp.eq.s32.totalorder %s11, 1
      %p28 = por %p26, %p27
      %p29 = scmp.ne.s32.totalorder %s21, %s24
      %p30 = scmp.eq.s32.totalorder %s11, 0
      %p31 = por %p29, %p30
      %p32 = scmp.ne.s32.totalorder %s21, %s24
      %p33 = scmp.eq.s32.totalorder %s16, 1
      %p34 = por %p32, %p33
      %p35 = scmp.ne.s32.totalorder %s24, %s25
      %p36 = scmp.eq.s32.totalorder %s16, 0
      %p37 = por %p35, %p36
      %p38 = scmp.ne.s32.totalorder %s24, %s25
      %p39 = scmp.eq.s32.totalorder %s17, 1
      %p40 = por %p38, %p39
      %p42 = scmp.ne.s32.totalorder %s25, %s41
      %p43 = scmp.eq.s32.totalorder %s17, 0
      %p44 = por %p42, %p43
      %s45 = ssub.s32 %s11, %s18
      %p46 = scmp.eq.s32.totalorder %s45, 0
      %s48 = sadd.s32 %s47, 1
      %s49 = scalar_select %p46, %s47, %s48
      %p52 = pneg %p46
      %p53 = scmp.eq.s32.totalorder %s11, 1
      %p54 = por %p52, %p53
      %p55 = scmp.ne.s32.totalorder %s47, %s50
      %p56 = scmp.eq.s32.totalorder %s11, 0
      %p57 = por %p55, %p56
      %p58 = scmp.ne.s32.totalorder %s47, %s50
      %p59 = scmp.eq.s32.totalorder %s16, 1
      %p60 = por %p58, %p59
      %p61 = scmp.ne.s32.totalorder %s50, %s51
      %p62 = scmp.eq.s32.totalorder %s16, 0
      %p63 = por %p61, %p62
      %p64 = scmp.ne.s32.totalorder %s50, %s51
      %p65 = scmp.eq.s32.totalorder %s17, 1
      %p66 = por %p64, %p65
      %p68 = scmp.ne.s32.totalorder %s51, %s67
      %p69 = scmp.eq.s32.totalorder %s17, 0
      %p70 = por %p68, %p69
      %s71 = ssub.s32 %s11, %s18
      %p72 = scmp.eq.s32.totalorder %s71, 0
      %s74 = sadd.s32 %s73, 1
      %s75 = scalar_select %p72, %s73, %s74
      %p78 = pneg %p72
      %p79 = scmp.eq.s32.totalorder %s11, 1
      %p80 = por %p78, %p79
      %p81 = scmp.ne.s32.totalorder %s73, %s76
      %p82 = scmp.eq.s32.totalorder %s11, 0
      %p83 = por %p81, %p82
      %p84 = scmp.ne.s32.totalorder %s73, %s76
      %p85 = scmp.eq.s32.totalorder %s16, 1
      %p86 = por %p84, %p85
      %p87 = scmp.ne.s32.totalorder %s76, %s77
      %p88 = scmp.eq.s32.totalorder %s16, 0
      %p89 = por %p87, %p88
      %p90 = scmp.ne.s32.totalorder %s76, %s77
      %p91 = scmp.eq.s32.totalorder %s17, 1
      %p92 = por %p90, %p91
      %p94 = scmp.ne.s32.totalorder %s77, %s93
      %p95 = scmp.eq.s32.totalorder %s17, 0
      %p96 = por %p94, %p95
      %p97 = scmp.le.s32.totalorder 1, %s11
      %p98 = scmp.lt.s32.totalorder %s11, 3
      %p99 = pnand %p97, %p98
      %p100 = pneg %p99
      // Predicated region
      $region9: #{tpu_custom_call.1} parent=5 // pred_check
        _
      $region10: #{tpu_custom_call.1} parent=5 // pred_check_branch
        %102 = sbr.rel (%p99) target = $region12
      $region11: #{tpu_custom_call.1} parent=5 // pred_region
        %s103 = ssub.s32 %s11, 1
      $region12: #{tpu_custom_call.1} parent=5 // pred_fallthru
        _
      %p104 = scmp.lt.s32.totalorder %s11, 2
      // Predicated region
      $region13: #{tpu_custom_call.1} parent=5 // pred_check
        %p105 = pneg %p104
      $region14: #{tpu_custom_call.1} parent=5 // pred_check_branch
        %107 = sbr.rel (%p105) target = $region16
      $region15: #{tpu_custom_call.1} parent=5 // pred_region
        // Predicated region
        $region17: #{tpu_custom_call.1} parent=15 // pred_check
          %p108 = pneg %p31
        $region18: #{tpu_custom_call.1} parent=15 // pred_check_branch
          %110 = sbr.rel (%p108) target = $region20
        $region19: #{tpu_custom_call.1} parent=15 // pred_region
          %p111 = scmp.lt.s32.totalorder %s11, 1
          %s112 = scalar_select %p111, %s11, 1
          %s113 = smul.addr %s112, 8
          %s114 = scalar_lea.vmem %s0, %s113
        $region20: #{tpu_custom_call.1} parent=15 // pred_fallthru
          _
        // Predicated region
        $region21: #{tpu_custom_call.1} parent=15 // pred_check
          %p115 = pneg %p57
        $region22: #{tpu_custom_call.1} parent=15 // pred_check_branch
          %117 = sbr.rel (%p115) target = $region24
        $region23: #{tpu_custom_call.1} parent=15 // pred_region
          %p118 = scmp.lt.s32.totalorder %s11, 1
          %s119 = scalar_select %p118, %s11, 1
          %s120 = smul.addr %s119, 8
          %s121 = scalar_lea.vmem %s1, %s120
        $region24: #{tpu_custom_call.1} parent=15 // pred_fallthru
          _
      $region16: #{tpu_custom_call.1} parent=5 // pred_fallthru
        _
      %p122 = scmp.le.s32.totalorder 1, %s11
      %p123 = scmp.lt.s32.totalorder %s11, 3
      %p124 = pnand %p122, %p123
      %p125 = pneg %p124
      // Predicated region
      $region25: #{tpu_custom_call.1} parent=5 // pred_check
        _
      $region26: #{tpu_custom_call.1} parent=5 // pred_check_branch
        %127 = sbr.rel (%p124) target = $region28
      $region27: #{tpu_custom_call.1} parent=5 // pred_region
        %s128 = ssub.s32 %s11, 1
        %p129 = scmp.lt.s32.totalorder %s16, 1
        %s130 = scalar_select %p129, %s16, 1
        %s131 = smul.addr %s130, 8
        %s132 = scalar_lea.vmem %s0, %s131
        %p133 = pneg %p37
        %p134 = pneg %p34
        %p135 = scmp.lt.s32.totalorder %s16, 1
        %s136 = scalar_select %p135, %s16, 1
        %s137 = smul.addr %s136, 8
        %s138 = scalar_lea.vmem %s1, %s137
        %p139 = pneg %p63
        %p140 = pneg %p60
        %p141 = pneg %p89
        %p142 = pneg %p86
        %s143 = sand.u32 %s76, 1
        %s144 = scalar_lea.sflag [#allocation3], %s143
        %s145 = sand.u32 %s76, 1
        %s146 = smul.addr %s145, 8
        %s147 = scalar_lea.vmem [#allocation2], %s146
        %p148 = scmp.lt.s32.totalorder %s16, 1
        %s149 = scalar_select %p148, %s16, 1
        %s150 = smul.addr %s149, 8
        %s151 = scalar_lea.vmem %s0, %s150
        %p152 = scmp.lt.s32.totalorder %s16, 1
        %s153 = scalar_select %p152, %s16, 1
        %s154 = smul.addr %s153, 8
        %s155 = scalar_lea.vmem %s1, %s154
        %v156 = vld [vmem:[%s151] sm:$0xff]
        %vm157 = vcmask 261120
        %v158 = vsel %vm157, %v156, -inf
        %159 = vmax.xlane.f32.xlu0 %v158
        %v160 = vpop.xlane.xlu0 %159
        %v161 = vsub.f32 %v156, %v160
        %v162 = vmul.f32 %v161, 1.442695
        %v163 = vpow.pop %v162
        %v164 = vsel %vm157, %v163, 0.0
        %165 = vadd.xlane.f32.xlu0 %v164
        %v166 = vpop.xlane.xlu0 %165
        %v167 = vlog2.pop %v166
        %v168 = vmul.f32 %v167, 0.6931472
        %v169 = vlaneseq
        %v170 = vand.u32 %v169, 127
        %v171 = vld [vmem:[%s155] sm:$0xff]
        %172 = vset.pattern.permute.xlu0 0
        %173 = vperm.xlu0 %172, %v171
        %v174 = vpop.permute.xlu0 %173
        %vm175 = vcmp.eq.s32.totalorder %v170, %v174
        %v176 = vsel %vm175, 0.9, 0.0032258064
        %v177 = vmul.f32 %v176, %v161
        %v178 = vsel %vm157, %v177, 0.0
        %179 = vadd.xlane.f32.xlu0 %v178
        %v180 = vpop.xlane.xlu0 %179
        %v181 = vsub.f32 %v180, %v168
        %v182 = vsub.f32 0.0, %v181
        %v183 = vlaneseq
        %v184 = vshrl.u32 %v183, 7
        %s185 = smul.u32 %s16, 8
        %v186 = vstv %s185
        %v187 = vadd.s32 %v186, %v184
        %vm188 = vcmp.lt.s32.totalorder %v187, 16
        %v189 = vsel %vm188, %v182, 0.0
        %vm190 = vcmask 7168
        %v191 = vsel %vm190, %v189, 0.0
        %192 = vadd.xlane.f32.xlu0 %v191
        %v193 = vpop.xlane.xlu0 %192
        %v194 = vrot.slane %v193, 4
        %v195 = vadd.f32 %v193, %v194
        %v196 = vrot.slane %v195, 2
        %v197 = vadd.f32 %v195, %v196
        %v198 = vrot.slane %v197, 1
        %v199 = vadd.f32 %v197, %v198
        %s200 = vtos %v199
        %s201 = smul.f32 %s200, 0.0009765625
        %v202 = vstv %s201
        %203 = vst [vmem:[%s147] sm:$0xff] %v202
        %s204 = sand.u32 %s76, 1
        %s205 = scalar_lea.sflag [#allocation3], %s204
        %s206 = sand.u32 %s76, 1
        %s207 = smul.addr %s206, 8
        %s208 = scalar_lea.vmem [#allocation2], %s207
        // Predicated region
        $region29: #{tpu_custom_call.1} parent=27 // pred_check
          %p209 = pneg %p86
        $region30: #{tpu_custom_call.1} parent=27 // pred_check_branch
          %211 = sbr.rel (%p209) target = $region32
        $region31: #{tpu_custom_call.1} parent=27 // pred_region
          %s213 = ssub.s32 128, 128
          %214 = vsyncadd %s205, %s213
          %s215 = smul.addr %s16, 128
          %s216 = scalar_lea.hbm %s2, %s215
          %s218 = sshll.u32 %s208, 4
          %s219 = int_to_ptr.vmem [resolvable:$true] %s218
          %221 = dma.vmem_to_hbm [thread:$0]  %s219, 128, %s216, %s205
        $region32: #{tpu_custom_call.1} parent=27 // pred_fallthru
          _
      $region28: #{tpu_custom_call.1} parent=5 // pred_fallthru
        _
      %p222 = scmp.le.s32.totalorder 2, %s11
      // Predicated region
      $region33: #{tpu_custom_call.1} parent=5 // pred_check
        %p223 = pneg %p222
      $region34: #{tpu_custom_call.1} parent=5 // pred_check_branch
        %225 = sbr.rel (%p223) target = $region36
      $region35: #{tpu_custom_call.1} parent=5 // pred_region
        %s226 = ssub.s32 %s11, 2
        // Predicated region
        $region37: #{tpu_custom_call.1} parent=35 // pred_check
          %p227 = pneg %p92
        $region38: #{tpu_custom_call.1} parent=35 // pred_check_branch
          %229 = sbr.rel (%p227) target = $region40
        $region39: #{tpu_custom_call.1} parent=35 // pred_region
          %s230 = sand.u32 %s77, 1
          %s231 = scalar_lea.sflag [#allocation3], %s230
          %s232 = sand.u32 %s77, 1
          %s233 = smul.addr %s232, 8
          %s234 = scalar_lea.vmem [#allocation2], %s233
          %235 = dma.done %s231, 128
        $region40: #{tpu_custom_call.1} parent=35 // pred_fallthru
          _
      $region36: #{tpu_custom_call.1} parent=5 // pred_fallthru
        _
    $region6: #{tpu_custom_call.1} parent=1 // loop_footer
      %s15 = sadd.s32 1, %s11
    $region7: #{tpu_custom_call.1} parent=1 // loop_footer_branch
      %10 = sbr.rel target = $region3
    $region8: #{tpu_custom_call.1} parent=1 // loop_exit
      _
    %236 = vsyncpa [#allocation3], 1
    %s237 = scalar_lea.sflag [#allocation3], 1
    %238 = vsyncpa %s237, 1

</llo_original>
